<compile_context>
chip_gen: v5e
topology: v5e:2x2
jax: 0.10.0
libtpu: 0.0.40
codegen_flags: <defaults>
</compile_context>

<pallas_src>
import functools

import jax
import jax.numpy as jnp
import numpy as np
from jax.experimental import pallas as pl
from jax.experimental.pallas import tpu as pltpu


def _mdconv_lane_kernel(w_ref, b_ref, x_ref, o_ref, pad_ref, *,
                        k, stride, p, th, wo, h_in, w_in, tn):
    """Depthwise conv on a lane-dense (H, W, N) slab.

    Refs (per grid step (n_tile, h_strip)):
      w_ref   : VMEM (k*k, TN)        per-lane kernel taps
      b_ref   : VMEM (1, TN)          per-lane bias
      x_ref   : VMEM (H, W, TN)       unpadded input slab (resident across h)
      o_ref   : VMEM (TH, Wo, TN)     output row strip
      pad_ref : VMEM (H+2p, W+2p, TN) zero-padded staging scratch (f32)
    """
    h_i = pl.program_id(1)

    # (Re)build the halo-padded copy once per N tile.  The input block index
    # does not depend on the h axis, so x_ref stays resident and the scratch
    # persists across the h strips of this tile.
    @pl.when(h_i == 0)
    def _():
        pad_ref[...] = jnp.zeros_like(pad_ref)
        pad_ref[p:p + h_in, p:p + w_in, :] = x_ref[...].astype(pad_ref.dtype)

    # Bias folded into the accumulator init (f32 accumulation).
    acc = jnp.broadcast_to(
        b_ref[...].astype(jnp.float32).reshape(1, 1, tn), (th, wo, tn))

    r0 = h_i * (th * stride)
    # k is tiny (3 / 5 / ...): fully unrolled shift-and-accumulate VPU FMAs.
    for kh in range(k):
        for kw in range(k):
            if stride == 1:
                patch = pad_ref[pl.ds(r0 + kh, th), pl.ds(kw, wo), :]
            else:
                # TODO(synk): stride>1 path applies pl.ds strides on the
                # leading/sublane dims only (never lanes); not exercised here.
                patch = pad_ref[pl.ds(r0 + kh, th, stride),
                                pl.ds(kw, wo, stride), :]
            w_tap = w_ref[kh * k + kw:kh * k + kw + 1, :].reshape(1, 1, tn)
            acc = acc + w_tap.astype(jnp.float32) * patch.astype(jnp.float32)

    o_ref[...] = acc.astype(o_ref.dtype)


def _round_up(x, m):
    return (x + m - 1) // m * m


def _mdconv_group(x_g, wt, bias, k, stride):
    """x_g: (B, Cg, T, H, W); wt: (Cg, k, k); bias: (Cg,) -> (B, Cg, T, Ho, Wo)."""
    b_, cg, t_, h_, w_ = x_g.shape
    p = (k - 1) // 2
    ho = (h_ + 2 * p - k) // stride + 1
    wo = (w_ + 2 * p - k) // stride + 1

    # Lane-dense relayout: (H, W, N) with N = B*T*Cg (channel fastest).
    n = b_ * t_ * cg
    npad = _round_up(n, 128)
    x_l = jnp.transpose(x_g, (3, 4, 0, 2, 1)).reshape(h_, w_, n)
    if npad != n:
        x_l = jnp.pad(x_l, ((0, 0), (0, 0), (0, npad - n)))

    # Broadcast per-channel taps / bias across B*T -> per-lane vectors.
    bt = b_ * t_
    w_l = jnp.tile(wt.reshape(cg, k * k).T, (1, bt))          # (k*k, N)
    b_l = jnp.tile(bias, bt).reshape(1, n)                    # (1,   N)
    if npad != n:
        w_l = jnp.pad(w_l, ((0, 0), (0, npad - n)))
        b_l = jnp.pad(b_l, ((0, 0), (0, npad - n)))

    # Tiling: lane tiles of TN, output rows in strips of TH (divisor of Ho).
    tn = 256 if npad % 256 == 0 else 128
    num_n = npad // tn
    th_cap = min(8, max(1, ho // 4))
    th = next(d for d in range(th_cap, 0, -1) if ho % d == 0)
    num_h = ho // th
    hp, wp = h_ + 2 * p, w_ + 2 * p

    kernel = functools.partial(
        _mdconv_lane_kernel, k=k, stride=stride, p=p, th=th, wo=wo,
        h_in=h_, w_in=w_, tn=tn)

    y = pl.pallas_call(
        kernel,
        out_shape=jax.ShapeDtypeStruct((ho, wo, npad), x_l.dtype),
        grid=(num_n, num_h),
        in_specs=[
            pl.BlockSpec((k * k, tn), lambda ni, hi: (0, ni)),       # taps
            pl.BlockSpec((1, tn), lambda ni, hi: (0, ni)),           # bias
            pl.BlockSpec((h_, w_, tn), lambda ni, hi: (0, 0, ni)),   # input
        ],
        out_specs=pl.BlockSpec((th, wo, tn), lambda ni, hi: (hi, 0, ni)),
        scratch_shapes=[pltpu.VMEM((hp, wp, tn), jnp.float32)],
        compiler_params=pltpu.CompilerParams(
            dimension_semantics=("parallel", "arbitrary"),
            vmem_limit_bytes=32 * 1024 * 1024,
        ),
    )(w_l, b_l, x_l)

    y = y[:, :, :n].reshape(ho, wo, b_, t_, cg)
    return jnp.transpose(y, (2, 4, 3, 0, 1))                  # (B, Cg, T, Ho, Wo)


def mdconv_forward(x, params, n_groups, stride):
    """MDConv forward.  x: (B, C, T, H, W).  params[i] = (w (Cg,k,k), b (Cg,))."""
    c_ = x.shape[1]
    cg = c_ // n_groups
    outs = []
    for i in range(n_groups):
        k = 2 * i + 3
        wt, bias = params[i]
        x_g = x[:, i * cg:(i + 1) * cg]
        outs.append(_mdconv_group(x_g, wt, bias, k, stride))
    return jnp.concatenate(outs, axis=1)


def mdconv_reference(x, params, n_groups, stride):
    """Pure-JAX reference (lax conv), matches torch Conv3d(1,k,k) depthwise."""
    b_, c_, t_, h_, w_ = x.shape
    cg = c_ // n_groups
    outs = []
    for i in range(n_groups):
        k = 2 * i + 3
        p = (k - 1) // 2
        wt, bias = params[i]
        x_g = x[:, i * cg:(i + 1) * cg]
        x2 = jnp.transpose(x_g, (0, 2, 1, 3, 4)).reshape(b_ * t_, cg, h_, w_)
        y = jax.lax.conv_general_dilated(
            x2, wt.reshape(cg, 1, k, k),
            window_strides=(stride, stride),
            padding=[(p, p), (p, p)],
            feature_group_count=cg,
            dimension_numbers=("NCHW", "OIHW", "NCHW"))
        y = y + bias[None, :, None, None]
        ho, wo = y.shape[-2:]
        y = y.reshape(b_, t_, cg, ho, wo).transpose(0, 2, 1, 3, 4)
        outs.append(y)
    return jnp.concatenate(outs, axis=1)


if __name__ == "__main__":
    # Module config (matches MDConv(inner_channels=4, n_groups=2, stride=1)).
    inner_channels, n_groups, stride = 4, 2, 1
    split_channels = inner_channels // n_groups

    # Small input: (B, C, T, H, W)
    B, T, H, W = 2, 3, 16, 16
    key = jax.random.PRNGKey(0)
    kx, kp = jax.random.split(key)
    x = jax.random.normal(kx, (B, inner_channels, T, H, W), dtype=jnp.float32)

    # Deterministic synthetic parameters (one depthwise conv per group,
    # kernel (1, k, k) with k = 2*i + 3, groups = split_channels).
    params = []
    for i in range(n_groups):
        k = 2 * i + 3
        kp, kw_key, kb_key = jax.random.split(kp, 3)
        wt = 0.1 * jax.random.normal(kw_key, (split_channels, k, k), dtype=jnp.float32)
        bias = 0.1 * jax.random.normal(kb_key, (split_channels,), dtype=jnp.float32)
        params.append((wt, bias))

    out = mdconv_forward(x, params, n_groups, stride)
    out = jax.block_until_ready(out)

    ref = jax.block_until_ready(mdconv_reference(x, params, n_groups, stride))
    assert out.shape == (B, inner_channels, T, H, W), out.shape
    np.testing.assert_allclose(np.asarray(out), np.asarray(ref), atol=1e-5, rtol=1e-5)

    print("KERNEL_OK")
</pallas_src>

<mosaic_0001>
module attributes {stable_mosaic.version = 11 : i64} {
  func.func @_mdconv_lane_kernel(%arg0: i32, %arg1: i32, %arg2: memref<9x128xf32, #tpu.memory_space<vmem>>, %arg3: memref<1x128xf32, #tpu.memory_space<vmem>>, %arg4: memref<16x16x128xf32, #tpu.memory_space<vmem>>, %arg5: memref<4x16x128xf32, #tpu.memory_space<vmem>>, %arg6: memref<18x18x128xf32, #tpu.memory_space<vmem>>) attributes {dimension_semantics = [#tpu.dimension_semantics<parallel>, #tpu.dimension_semantics<arbitrary>], iteration_bounds = array<i64: 1, 4>, scalar_prefetch = 0 : i64, scratch_operands = 1 : i64, tpu.core_type = #tpu.core_type<tc>, window_params = [{transform_indices = @transform_0, window_bounds = array<i64: 9, 128>}, {transform_indices = @transform_1, window_bounds = array<i64: 1, 128>}, {transform_indices = @transform_2, window_bounds = array<i64: 16, 16, 128>}, {transform_indices = @transform_3, window_bounds = array<i64: 4, 16, 128>}]} {
    %c0_i32 = arith.constant 0 : i32
    %0 = arith.cmpi eq, %arg1, %c0_i32 : i32
    %1 = arith.extui %0 : i1 to i32
    %c0_i32_0 = arith.constant 0 : i32
    %2 = arith.cmpi ne, %1, %c0_i32_0 : i32
    scf.if %2 {
      %cst = arith.constant 0.000000e+00 : f32
      %81 = vector.broadcast %cst : f32 to vector<18x18x128xf32>
      %c0_40 = arith.constant 0 : index
      %c0_41 = arith.constant 0 : index
      %c0_42 = arith.constant 0 : index
      %82 = vector.load %arg6[%c0_40, %c0_41, %c0_42] : memref<18x18x128xf32, #tpu.memory_space<vmem>>, vector<18x18x128xf32>
      tpu.vector_store %arg6[%c0_40, %c0_41, %c0_42], %81 {strides = array<i32>} : memref<18x18x128xf32, #tpu.memory_space<vmem>>, vector<18x18x128xf32>,
      %c0_43 = arith.constant 0 : index
      %c0_44 = arith.constant 0 : index
      %c0_45 = arith.constant 0 : index
      %83 = vector.load %arg4[%c0_43, %c0_44, %c0_45] : memref<16x16x128xf32, #tpu.memory_space<vmem>>, vector<16x16x128xf32>
      %c1_46 = arith.constant 1 : index
      %c1_47 = arith.constant 1 : index
      %c0_48 = arith.constant 0 : index
      %84 = vector.load %arg6[%c1_46, %c1_47, %c0_48] : memref<18x18x128xf32, #tpu.memory_space<vmem>>, vector<16x16x128xf32>
      tpu.vector_store %arg6[%c1_46, %c1_47, %c0_48], %83 {strides = array<i32>} : memref<18x18x128xf32, #tpu.memory_space<vmem>>, vector<16x16x128xf32>,
    } else {
    }
    %c0 = arith.constant 0 : index
    %c0_1 = arith.constant 0 : index
    %3 = vector.load %arg3[%c0, %c0_1] : memref<1x128xf32, #tpu.memory_space<vmem>>, vector<1x128xf32>
    %4 = vector.shape_cast %3 : vector<1x128xf32> to vector<1x1x128xf32>
    %5 = vector.shape_cast %4 : vector<1x1x128xf32> to vector<1x1x128xf32>
    %6 = vector.broadcast %5 : vector<1x1x128xf32> to vector<4x16x128xf32>
    %c4_i32 = arith.constant 4 : i32
    %7 = arith.muli %arg1, %c4_i32 : i32
    %c0_i32_2 = arith.constant 0 : i32
    %8 = arith.addi %7, %c0_i32_2 : i32
    %9 = arith.index_cast %8 : i32 to index
    %c0_3 = arith.constant 0 : index
    %c0_4 = arith.constant 0 : index
    %10 = vector.load %arg6[%9, %c0_3, %c0_4] : memref<18x18x128xf32, #tpu.memory_space<vmem>>, vector<4x16x128xf32>
    %c0_5 = arith.constant 0 : index
    %c0_6 = arith.constant 0 : index
    %11 = vector.load %arg2[%c0_5, %c0_6] : memref<9x128xf32, #tpu.memory_space<vmem>>, vector<1x128xf32>
    %12 = vector.shape_cast %11 : vector<1x128xf32> to vector<1x1x128xf32>
    %13 = vector.broadcast %12 : vector<1x1x128xf32> to vector<4x16x128xf32>
    %14 = arith.mulf %13, %10 : vector<4x16x128xf32>
    %15 = arith.addf %6, %14 : vector<4x16x128xf32>
    %c0_i32_7 = arith.constant 0 : i32
    %16 = arith.addi %7, %c0_i32_7 : i32
    %17 = arith.index_cast %16 : i32 to index
    %c1 = arith.constant 1 : index
    %c0_8 = arith.constant 0 : index
    %18 = vector.load %arg6[%17, %c1, %c0_8] : memref<18x18x128xf32, #tpu.memory_space<vmem>>, vector<4x16x128xf32>
    %c1_9 = arith.constant 1 : index
    %c0_10 = arith.constant 0 : index
    %19 = vector.load %arg2[%c1_9, %c0_10] : memref<9x128xf32, #tpu.memory_space<vmem>>, vector<1x128xf32>
    %20 = vector.shape_cast %19 : vector<1x128xf32> to vector<1x1x128xf32>
    %21 = vector.broadcast %20 : vector<1x1x128xf32> to vector<4x16x128xf32>
    %22 = arith.mulf %21, %18 : vector<4x16x128xf32>
    %23 = arith.addf %15, %22 : vector<4x16x128xf32>
    %c0_i32_11 = arith.constant 0 : i32
    %24 = arith.addi %7, %c0_i32_11 : i32
    %25 = arith.index_cast %24 : i32 to index
    %c2 = arith.constant 2 : index
    %c0_12 = arith.constant 0 : index
    %26 = vector.load %arg6[%25, %c2, %c0_12] : memref<18x18x128xf32, #tpu.memory_space<vmem>>, vector<4x16x128xf32>
    %c2_13 = arith.constant 2 : index
    %c0_14 = arith.constant 0 : index
    %27 = vector.load %arg2[%c2_13, %c0_14] : memref<9x128xf32, #tpu.memory_space<vmem>>, vector<1x128xf32>
    %28 = vector.shape_cast %27 : vector<1x128xf32> to vector<1x1x128xf32>
    %29 = vector.broadcast %28 : vector<1x1x128xf32> to vector<4x16x128xf32>
    %30 = arith.mulf %29, %26 : vector<4x16x128xf32>
    %31 = arith.addf %23, %30 : vector<4x16x128xf32>
    %c1_i32 = arith.constant 1 : i32
    %32 = arith.addi %7, %c1_i32 : i32
    %33 = arith.index_cast %32 : i32 to index
    %c0_15 = arith.constant 0 : index
    %c0_16 = arith.constant 0 : index
    %34 = vector.load %arg6[%33, %c0_15, %c0_16] : memref<18x18x128xf32, #tpu.memory_space<vmem>>, vector<4x16x128xf32>
    %c3 = arith.constant 3 : index
    %c0_17 = arith.constant 0 : index
    %35 = vector.load %arg2[%c3, %c0_17] : memref<9x128xf32, #tpu.memory_space<vmem>>, vector<1x128xf32>
    %36 = vector.shape_cast %35 : vector<1x128xf32> to vector<1x1x128xf32>
    %37 = vector.broadcast %36 : vector<1x1x128xf32> to vector<4x16x128xf32>
    %38 = arith.mulf %37, %34 : vector<4x16x128xf32>
    %39 = arith.addf %31, %38 : vector<4x16x128xf32>
    %c1_i32_18 = arith.constant 1 : i32
    %40 = arith.addi %7, %c1_i32_18 : i32
    %41 = arith.index_cast %40 : i32 to index
    %c1_19 = arith.constant 1 : index
    %c0_20 = arith.constant 0 : index
    %42 = vector.load %arg6[%41, %c1_19, %c0_20] : memref<18x18x128xf32, #tpu.memory_space<vmem>>, vector<4x16x128xf32>
    %c4 = arith.constant 4 : index
    %c0_21 = arith.constant 0 : index
    %43 = vector.load %arg2[%c4, %c0_21] : memref<9x128xf32, #tpu.memory_space<vmem>>, vector<1x128xf32>
    %44 = vector.shape_cast %43 : vector<1x128xf32> to vector<1x1x128xf32>
    %45 = vector.broadcast %44 : vector<1x1x128xf32> to vector<4x16x128xf32>
    %46 = arith.mulf %45, %42 : vector<4x16x128xf32>
    %47 = arith.addf %39, %46 : vector<4x16x128xf32>
    %c1_i32_22 = arith.constant 1 : i32
    %48 = arith.addi %7, %c1_i32_22 : i32
    %49 = arith.index_cast %48 : i32 to index
    %c2_23 = arith.constant 2 : index
    %c0_24 = arith.constant 0 : index
    %50 = vector.load %arg6[%49, %c2_23, %c0_24] : memref<18x18x128xf32, #tpu.memory_space<vmem>>, vector<4x16x128xf32>
    %c5 = arith.constant 5 : index
    %c0_25 = arith.constant 0 : index
    %51 = vector.load %arg2[%c5, %c0_25] : memref<9x128xf32, #tpu.memory_space<vmem>>, vector<1x128xf32>
    %52 = vector.shape_cast %51 : vector<1x128xf32> to vector<1x1x128xf32>
    %53 = vector.broadcast %52 : vector<1x1x128xf32> to vector<4x16x128xf32>
    %54 = arith.mulf %53, %50 : vector<4x16x128xf32>
    %55 = arith.addf %47, %54 : vector<4x16x128xf32>
    %c2_i32 = arith.constant 2 : i32
    %56 = arith.addi %7, %c2_i32 : i32
    %57 = arith.index_cast %56 : i32 to index
    %c0_26 = arith.constant 0 : index
    %c0_27 = arith.constant 0 : index
    %58 = vector.load %arg6[%57, %c0_26, %c0_27] : memref<18x18x128xf32, #tpu.memory_space<vmem>>, vector<4x16x128xf32>
    %c6 = arith.constant 6 : index
    %c0_28 = arith.constant 0 : index
    %59 = vector.load %arg2[%c6, %c0_28] : memref<9x128xf32, #tpu.memory_space<vmem>>, vector<1x128xf32>
    %60 = vector.shape_cast %59 : vector<1x128xf32> to vector<1x1x128xf32>
    %61 = vector.broadcast %60 : vector<1x1x128xf32> to vector<4x16x128xf32>
    %62 = arith.mulf %61, %58 : vector<4x16x128xf32>
    %63 = arith.addf %55, %62 : vector<4x16x128xf32>
    %c2_i32_29 = arith.constant 2 : i32
    %64 = arith.addi %7, %c2_i32_29 : i32
    %65 = arith.index_cast %64 : i32 to index
    %c1_30 = arith.constant 1 : index
    %c0_31 = arith.constant 0 : index
    %66 = vector.load %arg6[%65, %c1_30, %c0_31] : memref<18x18x128xf32, #tpu.memory_space<vmem>>, vector<4x16x128xf32>
    %c7 = arith.constant 7 : index
    %c0_32 = arith.constant 0 : index
    %67 = vector.load %arg2[%c7, %c0_32] : memref<9x128xf32, #tpu.memory_space<vmem>>, vector<1x128xf32>
    %68 = vector.shape_cast %67 : vector<1x128xf32> to vector<1x1x128xf32>
    %69 = vector.broadcast %68 : vector<1x1x128xf32> to vector<4x16x128xf32>
    %70 = arith.mulf %69, %66 : vector<4x16x128xf32>
    %71 = arith.addf %63, %70 : vector<4x16x128xf32>
    %c2_i32_33 = arith.constant 2 : i32
    %72 = arith.addi %7, %c2_i32_33 : i32
    %73 = arith.index_cast %72 : i32 to index
    %c2_34 = arith.constant 2 : index
    %c0_35 = arith.constant 0 : index
    %74 = vector.load %arg6[%73, %c2_34, %c0_35] : memref<18x18x128xf32, #tpu.memory_space<vmem>>, vector<4x16x128xf32>
    %c8 = arith.constant 8 : index
    %c0_36 = arith.constant 0 : index
    %75 = vector.load %arg2[%c8, %c0_36] : memref<9x128xf32, #tpu.memory_space<vmem>>, vector<1x128xf32>
    %76 = vector.shape_cast %75 : vector<1x128xf32> to vector<1x1x128xf32>
    %77 = vector.broadcast %76 : vector<1x1x128xf32> to vector<4x16x128xf32>
    %78 = arith.mulf %77, %74 : vector<4x16x128xf32>
    %79 = arith.addf %71, %78 : vector<4x16x128xf32>
    %c0_37 = arith.constant 0 : index
    %c0_38 = arith.constant 0 : index
    %c0_39 = arith.constant 0 : index
    %80 = vector.load %arg5[%c0_37, %c0_38, %c0_39] : memref<4x16x128xf32, #tpu.memory_space<vmem>>, vector<4x16x128xf32>
    tpu.vector_store %arg5[%c0_37, %c0_38, %c0_39], %79 {strides = array<i32>} : memref<4x16x128xf32, #tpu.memory_space<vmem>>, vector<4x16x128xf32>,
    return
  }
  func.func @transform_0(%arg0: i32, %arg1: i32) -> (i32, i32) {
    %c0_i32 = arith.constant 0 : i32
    %c0_i32_0 = arith.constant 0 : i32
    return %c0_i32, %arg0 : i32, i32
  }
  func.func @transform_1(%arg0: i32, %arg1: i32) -> (i32, i32) {
    %c0_i32 = arith.constant 0 : i32
    %c0_i32_0 = arith.constant 0 : i32
    return %c0_i32, %arg0 : i32, i32
  }
  func.func @transform_2(%arg0: i32, %arg1: i32) -> (i32, i32, i32) {
    %c0_i32 = arith.constant 0 : i32
    %c0_i32_0 = arith.constant 0 : i32
    %c0_i32_1 = arith.constant 0 : i32
    return %c0_i32, %c0_i32_0, %arg0 : i32, i32, i32
  }
  func.func @transform_3(%arg0: i32, %arg1: i32) -> (i32, i32, i32) {
    %c0_i32 = arith.constant 0 : i32
    %c0_i32_0 = arith.constant 0 : i32
    return %arg1, %c0_i32, %arg0 : i32, i32, i32
  }
}

</mosaic_0001>

<llo_original>
// kernel: tpu_custom_call.1
$region0: #{tpu_custom_call.1}
  #allocation0 [shape = 'u32[]', space=smem, size = 0x4, offset = 0x4, fixed_abs, tag = 'smem constant byte address 0x4 - core index']
  #allocation1 [shape = 'u32[72,128]{1,0:T(1,128)}', space=vmem, size = 0x9000, scoped, tag = 'internal scratch']
  #allocation2 [shape = 'f32[18,18,128]{2,1,0:T(8,128)}', space=vmem, size = 0x36000, scoped, tag = 'scratch operand']
  %s0 = inlined_call_operand.hbm [shape: f32[9,128], index: 0, kind: input, shape index: {}]
  %s1 = inlined_call_operand.hbm [shape: f32[1,128], index: 1, kind: input, shape index: {}]
  %s2 = inlined_call_operand.hbm [shape: f32[16,16,128], index: 2, kind: input, shape index: {}]
  %s3 = inlined_call_operand.hbm [shape: f32[16,16,128], index: 3, kind: output, shape index: {}]
  %s4 = sld [smem:[#allocation0]]
  $region61: #{tpu_custom_call.1} parent=0
    _
  %s6 = ssub.s32 1, %s4
  %s7 = scalar_select 0, %s6, %s4
  $region1: #{tpu_custom_call.1} parent=0
    #allocation3 [shape = 'u8[8192]{0}', space=vmem, size = 0x2000, scoped, tag = 'input window, operand 0, single buffered']
    #allocation4 [shape = 's32[2]{0}', space=sflag, size = 0x8, scoped, tag = 'scoped memory for tpu_custom_call.1']
    #allocation5 [shape = 's32[2]{0}', space=sflag, size = 0x8, scoped, tag = 'scoped memory for tpu_custom_call.1']
    #allocation6 [shape = 'u8[512]{0}', space=vmem, size = 0x400, scoped, tag = 'input window, operand 1, single buffered']
    #allocation7 [shape = 's32[1]{0}', space=sflag, size = 0x4, scoped, tag = 'scoped memory for tpu_custom_call.1']
    #allocation8 [shape = 'u8[131072]{0}', space=vmem, size = 0x20000, scoped, tag = 'input window, operand 2, single buffered']
    #allocation9 [shape = 'u8[65536]{0}', space=vmem, size = 0x10000, scoped, tag = 'output window, operand 0']
    %8 = vsyncpa [#allocation4], 0
    %9 = vsyncpa [#allocation7], 0
    %10 = vsyncpa [#allocation5], 0
    %s11 = scalar_lea.sflag [#allocation5], 1
    %12 = vsyncpa %s11, 0
    loop: start=0, step=1, limit=6
    $region2: #{tpu_custom_call.1} parent=1 // loop_pre_header
      _
    $region3: #{tpu_custom_call.1} parent=1 // loop_header
      %s14 = sphi 0, %s18
      %p15 = scmp.ge.s32.totalorder %s14, 6
      %s21 = sphi 0, %s33
      %s22 = sphi 0, %s29
      %s23 = sphi 0, %s21
      %s24 = sphi 0, %s22
      %s25 = sphi 0, %s23
      %s26 = sphi 0, %s24
      %s36 = sphi 0, %s38
      %s39 = sphi 0, %s36
      %s40 = sphi 0, %s39
      %s56 = sphi 0, %s40
      %s62 = sphi 0, %s64
      %s65 = sphi 0, %s62
      %s66 = sphi 0, %s65
      %s82 = sphi 0, %s66
      %s88 = sphi 0, %s90
      %s91 = sphi 0, %s88
      %s92 = sphi 0, %s91
      %s108 = sphi 0, %s92
      %s116 = sphi 0, %s118
      %s119 = sphi 0, %s116
      %s120 = sphi 0, %s119
      %s136 = sphi 0, %s120
    $region4: #{tpu_custom_call.1} parent=1 // loop_header_branch
      %17 = sbr.rel (%p15) target = $region8
    $region5: #{tpu_custom_call.1} parent=1 // loop_body
      %s19 = ssub.s32 %s14, 1
      %s20 = ssub.s32 %s14, 2
      %s27 = sadd.s32 1, %s22
      %p28 = scmp.ge.s32.totalorder %s27, 4
      %s29 = scalar_select %p28, 0, %s27
      %s30 = sadd.s32 1, %s21
      %s31 = scalar_select %p28, %s30, %s21
      %p32 = scmp.ge.s32.totalorder %s31, 1
      %s33 = scalar_select %p32, 0, %s31
      %s34 = ssub.s32 %s21, %s33
      %p35 = scmp.eq.s32.totalorder %s34, 0
      %s37 = sadd.s32 %s36, 1
      %s38 = scalar_select %p35, %s36, %s37
      %p41 = pneg %p35
      %p42 = scmp.eq.s32.totalorder %s14, 3
      %p43 = por %p41, %p42
      %p44 = scmp.ne.s32.totalorder %s36, %s39
      %p45 = scmp.eq.s32.totalorder %s14, 0
      %p46 = por %p44, %p45
      %p47 = scmp.ne.s32.totalorder %s36, %s39
      %p48 = scmp.eq.s32.totalorder %s19, 3
      %p49 = por %p47, %p48
      %p50 = scmp.ne.s32.totalorder %s39, %s40
      %p51 = scmp.eq.s32.totalorder %s19, 0
      %p52 = por %p50, %p51
      %p53 = scmp.ne.s32.totalorder %s39, %s40
      %p54 = scmp.eq.s32.totalorder %s20, 3
      %p55 = por %p53, %p54
      %p57 = scmp.ne.s32.totalorder %s40, %s56
      %p58 = scmp.eq.s32.totalorder %s20, 0
      %p59 = por %p57, %p58
      %s60 = ssub.s32 %s21, %s33
      %p61 = scmp.eq.s32.totalorder %s60, 0
      %s63 = sadd.s32 %s62, 1
      %s64 = scalar_select %p61, %s62, %s63
      %p67 = pneg %p61
      %p68 = scmp.eq.s32.totalorder %s14, 3
      %p69 = por %p67, %p68
      %p70 = scmp.ne.s32.totalorder %s62, %s65
      %p71 = scmp.eq.s32.totalorder %s14, 0
      %p72 = por %p70, %p71
      %p73 = scmp.ne.s32.totalorder %s62, %s65
      %p74 = scmp.eq.s32.totalorder %s19, 3
      %p75 = por %p73, %p74
      %p76 = scmp.ne.s32.totalorder %s65, %s66
      %p77 = scmp.eq.s32.totalorder %s19, 0
      %p78 = por %p76, %p77
      %p79 = scmp.ne.s32.totalorder %s65, %s66
      %p80 = scmp.eq.s32.totalorder %s20, 3
      %p81 = por %p79, %p80
      %p83 = scmp.ne.s32.totalorder %s66, %s82
      %p84 = scmp.eq.s32.totalorder %s20, 0
      %p85 = por %p83, %p84
      %s86 = ssub.s32 %s21, %s33
      %p87 = scmp.eq.s32.totalorder %s86, 0
      %s89 = sadd.s32 %s88, 1
      %s90 = scalar_select %p87, %s88, %s89
      %p93 = pneg %p87
      %p94 = scmp.eq.s32.totalorder %s14, 3
      %p95 = por %p93, %p94
      %p96 = scmp.ne.s32.totalorder %s88, %s91
      %p97 = scmp.eq.s32.totalorder %s14, 0
      %p98 = por %p96, %p97
      %p99 = scmp.ne.s32.totalorder %s88, %s91
      %p100 = scmp.eq.s32.totalorder %s19, 3
      %p101 = por %p99, %p100
      %p102 = scmp.ne.s32.totalorder %s91, %s92
      %p103 = scmp.eq.s32.totalorder %s19, 0
      %p104 = por %p102, %p103
      %p105 = scmp.ne.s32.totalorder %s91, %s92
      %p106 = scmp.eq.s32.totalorder %s20, 3
      %p107 = por %p105, %p106
      %p109 = scmp.ne.s32.totalorder %s92, %s108
      %p110 = scmp.eq.s32.totalorder %s20, 0
      %p111 = por %p109, %p110
      %s112 = ssub.s32 %s22, %s29
      %s113 = ssub.s32 %s21, %s33
      %s114 = sor.u32 %s112, %s113
      %p115 = scmp.eq.s32.totalorder %s114, 0
      %s117 = sadd.s32 %s116, 1
      %s118 = scalar_select %p115, %s116, %s117
      %p121 = pneg %p115
      %p122 = scmp.eq.s32.totalorder %s14, 3
      %p123 = por %p121, %p122
      %p124 = scmp.ne.s32.totalorder %s116, %s119
      %p125 = scmp.eq.s32.totalorder %s14, 0
      %p126 = por %p124, %p125
      %p127 = scmp.ne.s32.totalorder %s116, %s119
      %p128 = scmp.eq.s32.totalorder %s19, 3
      %p129 = por %p127, %p128
      %p130 = scmp.ne.s32.totalorder %s119, %s120
      %p131 = scmp.eq.s32.totalorder %s19, 0
      %p132 = por %p130, %p131
      %p133 = scmp.ne.s32.totalorder %s119, %s120
      %p134 = scmp.eq.s32.totalorder %s20, 3
      %p135 = por %p133, %p134
      %p137 = scmp.ne.s32.totalorder %s120, %s136
      %p138 = scmp.eq.s32.totalorder %s20, 0
      %p139 = por %p137, %p138
      %p140 = scmp.le.s32.totalorder 1, %s14
      %p141 = scmp.lt.s32.totalorder %s14, 5
      %p142 = pnand %p140, %p141
      %p143 = pneg %p142
      // Predicated region
      $region9: #{tpu_custom_call.1} parent=5 // pred_check
        _
      $region10: #{tpu_custom_call.1} parent=5 // pred_check_branch
        %145 = sbr.rel (%p142) target = $region12
      $region11: #{tpu_custom_call.1} parent=5 // pred_region
        %s146 = ssub.s32 %s14, 1
        // Predicated region
        $region13: #{tpu_custom_call.1} parent=11 // pred_check
          %p147 = pneg %p52
        $region14: #{tpu_custom_call.1} parent=11 // pred_check_branch
          %149 = sbr.rel (%p147) target = $region16
        $region15: #{tpu_custom_call.1} parent=11 // pred_region
          %151 = vsyncadd [#allocation4], 0
          %s152 = smul.addr %s23, 8
          %s153 = scalar_lea.hbm %s0, %s152
          %s154 = sshll.u32 %s153, 4
          %s155 = int_to_ptr.hbm [resolvable:$true] %s154
          %s156 = sshll.u32 [#allocation3], 4
          %s157 = int_to_ptr.vmem [resolvable:$true] %s156
          %162 = dma.hbm_to_vmem [thread:$0]  %s155, 256, %s157, [#allocation4], 128, 128, 8
        $region16: #{tpu_custom_call.1} parent=11 // pred_fallthru
          _
        // Predicated region
        $region17: #{tpu_custom_call.1} parent=11 // pred_check
          %p163 = pneg %p78
        $region18: #{tpu_custom_call.1} parent=11 // pred_check_branch
          %165 = sbr.rel (%p163) target = $region20
        $region19: #{tpu_custom_call.1} parent=11 // pred_region
          %167 = vsyncadd [#allocation7], 0
          %s168 = scalar_lea.hbm %s1, %s23
          %s170 = sshll.u32 %s168, 4
          %s171 = int_to_ptr.hbm [resolvable:$true] %s170
          %s172 = sshll.u32 [#allocation6], 4
          %s173 = int_to_ptr.vmem [resolvable:$true] %s172
          %175 = dma.hbm_to_vmem [thread:$0]  %s171, 16, %s173, [#allocation7]
        $region20: #{tpu_custom_call.1} parent=11 // pred_fallthru
          _
        // Predicated region
        $region21: #{tpu_custom_call.1} parent=11 // pred_check
          %p176 = pneg %p104
        $region22: #{tpu_custom_call.1} parent=11 // pred_check_branch
          %178 = sbr.rel (%p176) target = $region24
        $region23: #{tpu_custom_call.1} parent=11 // pred_region
          %180 = vsyncadd [#allocation7], 0
          %s181 = smul.addr %s23, 8
          %s182 = scalar_lea.hbm %s2, %s181
          %s183 = sshll.u32 %s182, 4
          %s184 = int_to_ptr.hbm [resolvable:$true] %s183
          %s185 = sshll.u32 [#allocation8], 4
          %s186 = int_to_ptr.vmem [resolvable:$true] %s185
          %191 = dma.hbm_to_vmem [thread:$0]  %s184, 4096, %s186, [#allocation7], 128, 128, 8
        $region24: #{tpu_custom_call.1} parent=11 // pred_fallthru
          _
      $region12: #{tpu_custom_call.1} parent=5 // pred_fallthru
        _
      %p192 = scmp.lt.s32.totalorder %s14, 4
      // Predicated region
      $region25: #{tpu_custom_call.1} parent=5 // pred_check
        %p193 = pneg %p192
      $region26: #{tpu_custom_call.1} parent=5 // pred_check_branch
        %195 = sbr.rel (%p193) target = $region28
      $region27: #{tpu_custom_call.1} parent=5 // pred_region
        _
      $region28: #{tpu_custom_call.1} parent=5 // pred_fallthru
        _
      %p196 = scmp.le.s32.totalorder 1, %s14
      %p197 = scmp.lt.s32.totalorder %s14, 5
      %p198 = pnand %p196, %p197
      %p199 = pneg %p198
      // Predicated region
      $region29: #{tpu_custom_call.1} parent=5 // pred_check
        _
      $region30: #{tpu_custom_call.1} parent=5 // pred_check_branch
        %201 = sbr.rel (%p198) target = $region32
      $region31: #{tpu_custom_call.1} parent=5 // pred_region
        %s202 = ssub.s32 %s14, 1
        // Predicated region
        $region33: #{tpu_custom_call.1} parent=31 // pred_check
          %p203 = pneg %p52
        $region34: #{tpu_custom_call.1} parent=31 // pred_check_branch
          %205 = sbr.rel (%p203) target = $region36
        $region35: #{tpu_custom_call.1} parent=31 // pred_region
          %207 = dma.done [#allocation4], 256
        $region36: #{tpu_custom_call.1} parent=31 // pred_fallthru
          _
        // Predicated region
        $region37: #{tpu_custom_call.1} parent=31 // pred_check
          %p208 = pneg %p78
        $region38: #{tpu_custom_call.1} parent=31 // pred_check_branch
          %210 = sbr.rel (%p208) target = $region40
        $region39: #{tpu_custom_call.1} parent=31 // pred_region
          %212 = dma.done [#allocation7], 16
        $region40: #{tpu_custom_call.1} parent=31 // pred_fallthru
          _
        // Predicated region
        $region41: #{tpu_custom_call.1} parent=31 // pred_check
          %p213 = pneg %p104
        $region42: #{tpu_custom_call.1} parent=31 // pred_check_branch
          %215 = sbr.rel (%p213) target = $region44
        $region43: #{tpu_custom_call.1} parent=31 // pred_region
          %217 = dma.done [#allocation7], 4096
        $region44: #{tpu_custom_call.1} parent=31 // pred_fallthru
          _
        %p218 = pneg %p52
        %p219 = pneg %p49
        %p220 = pneg %p78
        %p221 = pneg %p75
        %p222 = pneg %p104
        %p223 = pneg %p101
        %p224 = pneg %p132
        %p225 = pneg %p129
        %s226 = sand.u32 %s119, 1
        %s227 = scalar_lea.sflag [#allocation5], %s226
        %s228 = sand.u32 %s119, 1
        %s229 = smul.addr %s228, 64
        %s230 = scalar_lea.vmem [#allocation9], %s229
        %s231 = smul.u32 4, %s24
        %p232 = scmp.eq.s32.totalorder %s24, 0
        // Predicated region
        $region45: #{tpu_custom_call.1} parent=31 // pred_check
          %p233 = pneg %p232
        $region46: #{tpu_custom_call.1} parent=31 // pred_check_branch
          %235 = sbr.rel (%p233) target = $region48
        $region47: #{tpu_custom_call.1} parent=31 // pred_region
          %236 = vst [vmem:[#allocation2] sm:$0xff] 0.0
          %237 = vst [vmem:[#allocation2 + $0x8] sm:$0xff] 0.0
          %238 = vst [vmem:[#allocation2 + $0x10] sm:$0x3] 0.0
          %239 = vst [vmem:[#allocation2 + $0x18] sm:$0xff] 0.0
          %240 = vst [vmem:[#allocation2 + $0x20] sm:$0xff] 0.0
          %241 = vst [vmem:[#allocation2 + $0x28] sm:$0x3] 0.0
          %242 = vst [vmem:[#allocation2 + $0x30] sm:$0xff] 0.0
          %243 = vst [vmem:[#allocation2 + $0x38] sm:$0xff] 0.0
          %244 = vst [vmem:[#allocation2 + $0x40] sm:$0x3] 0.0
          %245 = vst [vmem:[#allocation2 + $0x48] sm:$0xff] 0.0
          %246 = vst [vmem:[#allocation2 + $0x50] sm:$0xff] 0.0
          %247 = vst [vmem:[#allocation2 + $0x58] sm:$0x3] 0.0
          %248 = vst [vmem:[#allocation2 + $0x60] sm:$0xff] 0.0
          %249 = vst [vmem:[#allocation2 + $0x68] sm:$0xff] 0.0
          %250 = vst [vmem:[#allocation2 + $0x70] sm:$0x3] 0.0
          %251 = vst [vmem:[#allocation2 + $0x78] sm:$0xff] 0.0
          %252 = vst [vmem:[#allocation2 + $0x80] sm:$0xff] 0.0
          %253 = vst [vmem:[#allocation2 + $0x88] sm:$0x3] 0.0
          %254 = vst [vmem:[#allocation2 + $0x90] sm:$0xff] 0.0
          %255 = vst [vmem:[#allocation2 + $0x98] sm:$0xff] 0.0
          %256 = vst [vmem:[#allocation2 + $0xa0] sm:$0x3] 0.0
          %257 = vst [vmem:[#allocation2 + $0xa8] sm:$0xff] 0.0
          %258 = vst [vmem:[#allocation2 + $0xb0] sm:$0xff] 0.0
          %259 = vst [vmem:[#allocation2 + $0xb8] sm:$0x3] 0.0
          %260 = vst [vmem:[#allocation2 + $0xc0] sm:$0xff] 0.0
          %261 = vst [vmem:[#allocation2 + $0xc8] sm:$0xff] 0.0
          %262 = vst [vmem:[#allocation2 + $0xd0] sm:$0x3] 0.0
          %263 = vst [vmem:[#allocation2 + $0xd8] sm:$0xff] 0.0
          %264 = vst [vmem:[#allocation2 + $0xe0] sm:$0xff] 0.0
          %265 = vst [vmem:[#allocation2 + $0xe8] sm:$0x3] 0.0
          %266 = vst [vmem:[#allocation2 + $0xf0] sm:$0xff] 0.0
          %267 = vst [vmem:[#allocation2 + $0xf8] sm:$0xff] 0.0
          %268 = vst [vmem:[#allocation2 + $0x100] sm:$0x3] 0.0
          %269 = vst [vmem:[#allocation2 + $0x108] sm:$0xff] 0.0
          %270 = vst [vmem:[#allocation2 + $0x110] sm:$0xff] 0.0
          %271 = vst [vmem:[#allocation2 + $0x118] sm:$0x3] 0.0
          %272 = vst [vmem:[#allocation2 + $0x120] sm:$0xff] 0.0
          %273 = vst [vmem:[#allocation2 + $0x128] sm:$0xff] 0.0
          %274 = vst [vmem:[#allocation2 + $0x130] sm:$0x3] 0.0
          %275 = vst [vmem:[#allocation2 + $0x138] sm:$0xff] 0.0
          %276 = vst [vmem:[#allocation2 + $0x140] sm:$0xff] 0.0
          %277 = vst [vmem:[#allocation2 + $0x148] sm:$0x3] 0.0
          %278 = vst [vmem:[#allocation2 + $0x150] sm:$0xff] 0.0
          %279 = vst [vmem:[#allocation2 + $0x158] sm:$0xff] 0.0
          %280 = vst [vmem:[#allocation2 + $0x160] sm:$0x3] 0.0
          %281 = vst [vmem:[#allocation2 + $0x168] sm:$0xff] 0.0
          %282 = vst [vmem:[#allocation2 + $0x170] sm:$0xff] 0.0
          %283 = vst [vmem:[#allocation2 + $0x178] sm:$0x3] 0.0
          %284 = vst [vmem:[#allocation2 + $0x180] sm:$0xff] 0.0
          %285 = vst [vmem:[#allocation2 + $0x188] sm:$0xff] 0.0
          %286 = vst [vmem:[#allocation2 + $0x190] sm:$0x3] 0.0
          %287 = vst [vmem:[#allocation2 + $0x198] sm:$0xff] 0.0
          %288 = vst [vmem:[#allocation2 + $0x1a0] sm:$0xff] 0.0
          %289 = vst [vmem:[#allocation2 + $0x1a8] sm:$0x3] 0.0
          %v290 = vld [vmem:[#allocation8] sm:$0xff]
          %v291 = vld [vmem:[#allocation8 + $0x8] sm:$0xff]
          %v292 = vld [vmem:[#allocation8 + $0x10] sm:$0xff]
          %v293 = vld [vmem:[#allocation8 + $0x18] sm:$0xff]
          %v294 = vld [vmem:[#allocation8 + $0x20] sm:$0xff]
          %v295 = vld [vmem:[#allocation8 + $0x28] sm:$0xff]
          %v296 = vld [vmem:[#allocation8 + $0x30] sm:$0xff]
          %v297 = vld [vmem:[#allocation8 + $0x38] sm:$0xff]
          %v298 = vld [vmem:[#allocation8 + $0x40] sm:$0xff]
          %v299 = vld [vmem:[#allocation8 + $0x48] sm:$0xff]
          %v300 = vld [vmem:[#allocation8 + $0x50] sm:$0xff]
          %v301 = vld [vmem:[#allocation8 + $0x58] sm:$0xff]
          %v302 = vld [vmem:[#allocation8 + $0x60] sm:$0xff]
          %v303 = vld [vmem:[#allocation8 + $0x68] sm:$0xff]
          %v304 = vld [vmem:[#allocation8 + $0x70] sm:$0xff]
          %v305 = vld [vmem:[#allocation8 + $0x78] sm:$0xff]
          %v306 = vld [vmem:[#allocation8 + $0x80] sm:$0xff]
          %v307 = vld [vmem:[#allocation8 + $0x88] sm:$0xff]
          %v308 = vld [vmem:[#allocation8 + $0x90] sm:$0xff]
          %v309 = vld [vmem:[#allocation8 + $0x98] sm:$0xff]
          %v310 = vld [vmem:[#allocation8 + $0xa0] sm:$0xff]
          %v311 = vld [vmem:[#allocation8 + $0xa8] sm:$0xff]
          %v312 = vld [vmem:[#allocation8 + $0xb0] sm:$0xff]
          %v313 = vld [vmem:[#allocation8 + $0xb8] sm:$0xff]
          %v314 = vld [vmem:[#allocation8 + $0xc0] sm:$0xff]
          %v315 = vld [vmem:[#allocation8 + $0xc8] sm:$0xff]
          %v316 = vld [vmem:[#allocation8 + $0xd0] sm:$0xff]
          %v317 = vld [vmem:[#allocation8 + $0xd8] sm:$0xff]
          %v318 = vld [vmem:[#allocation8 + $0xe0] sm:$0xff]
          %v319 = vld [vmem:[#allocation8 + $0xe8] sm:$0xff]
          %v320 = vld [vmem:[#allocation8 + $0xf0] sm:$0xff]
          %v321 = vld [vmem:[#allocation8 + $0xf8] sm:$0xff]
          %s322 = scalar_lea.vmem [#allocation2], 24
          %323 = vst [vmem:[%s322 + $0x1] sm:$0xff] %v290
          %324 = vst [vmem:[%s322 + $0x9] sm:$0xff] %v291
          %325 = vst [vmem:[%s322 + $0x19] sm:$0xff] %v292
          %326 = vst [vmem:[%s322 + $0x21] sm:$0xff] %v293
          %327 = vst [vmem:[%s322 + $0x31] sm:$0xff] %v294
          %328 = vst [vmem:[%s322 + $0x39] sm:$0xff] %v295
          %329 = vst [vmem:[%s322 + $0x49] sm:$0xff] %v296
          %330 = vst [vmem:[%s322 + $0x51] sm:$0xff] %v297
          %331 = vst [vmem:[%s322 + $0x61] sm:$0xff] %v298
          %332 = vst [vmem:[%s322 + $0x69] sm:$0xff] %v299
          %333 = vst [vmem:[%s322 + $0x79] sm:$0xff] %v300
          %334 = vst [vmem:[%s322 + $0x81] sm:$0xff] %v301
          %335 = vst [vmem:[%s322 + $0x91] sm:$0xff] %v302
          %336 = vst [vmem:[%s322 + $0x99] sm:$0xff] %v303
          %337 = vst [vmem:[%s322 + $0xa9] sm:$0xff] %v304
          %338 = vst [vmem:[%s322 + $0xb1] sm:$0xff] %v305
          %339 = vst [vmem:[%s322 + $0xc1] sm:$0xff] %v306
          %340 = vst [vmem:[%s322 + $0xc9] sm:$0xff] %v307
          %341 = vst [vmem:[%s322 + $0xd9] sm:$0xff] %v308
          %342 = vst [vmem:[%s322 + $0xe1] sm:$0xff] %v309
          %343 = vst [vmem:[%s322 + $0xf1] sm:$0xff] %v310
          %344 = vst [vmem:[%s322 + $0xf9] sm:$0xff] %v311
          %345 = vst [vmem:[%s322 + $0x109] sm:$0xff] %v312
          %346 = vst [vmem:[%s322 + $0x111] sm:$0xff] %v313
          %347 = vst [vmem:[%s322 + $0x121] sm:$0xff] %v314
          %348 = vst [vmem:[%s322 + $0x129] sm:$0xff] %v315
          %349 = vst [vmem:[%s322 + $0x139] sm:$0xff] %v316
          %350 = vst [vmem:[%s322 + $0x141] sm:$0xff] %v317
          %351 = vst [vmem:[%s322 + $0x151] sm:$0xff] %v318
          %352 = vst [vmem:[%s322 + $0x159] sm:$0xff] %v319
          %353 = vst [vmem:[%s322 + $0x169] sm:$0xff] %v320
          %354 = vst [vmem:[%s322 + $0x171] sm:$0xff] %v321
        $region48: #{tpu_custom_call.1} parent=31 // pred_fallthru
          _
        %v355 = vld [vmem:[#allocation6] sm:$0x1]
        %v357 = vperm.slane %v355, 0
        %s359 = smul.u32 %s24, 4
        %s360 = smul.u32 %s359, 24
        %s361 = scalar_lea.vmem [#allocation2], %s360
        %v362 = vld [vmem:[%s361] sm:$0xff]
        %v363 = vld [vmem:[%s361 + $0x8] sm:$0xff]
        %v364 = vld [vmem:[%s361 + $0x18] sm:$0xff]
        %v365 = vld [vmem:[%s361 + $0x20] sm:$0xff]
        %v366 = vld [vmem:[%s361 + $0x30] sm:$0xff]
        %v367 = vld [vmem:[%s361 + $0x38] sm:$0xff]
        %v368 = vld [vmem:[%s361 + $0x48] sm:$0xff]
        %v369 = vld [vmem:[%s361 + $0x50] sm:$0xff]
        %v370 = vld [vmem:[#allocation3] sm:$0x1]
        %v371 = vperm.slane %v370, 0
        %v372 = vmul.f32 %v371, %v362
        %v373 = vmul.f32 %v371, %v363
        %v374 = vmul.f32 %v371, %v364
        %v375 = vmul.f32 %v371, %v365
        %v376 = vmul.f32 %v371, %v366
        %v377 = vmul.f32 %v371, %v367
        %v378 = vmul.f32 %v371, %v368
        %v379 = vmul.f32 %v371, %v369
        %v380 = vadd.f32 %v357, %v372
        %v381 = vadd.f32 %v357, %v373
        %v382 = vadd.f32 %v357, %v374
        %v383 = vadd.f32 %v357, %v375
        %v384 = vadd.f32 %v357, %v376
        %v385 = vadd.f32 %v357, %v377
        %v386 = vadd.f32 %v357, %v378
        %v387 = vadd.f32 %v357, %v379
        %v388 = vld [vmem:[%s361 + $0x1] sm:$0xff]
        %v389 = vld [vmem:[%s361 + $0x9] sm:$0xff]
        %v390 = vld [vmem:[%s361 + $0x19] sm:$0xff]
        %v391 = vld [vmem:[%s361 + $0x21] sm:$0xff]
        %v392 = vld [vmem:[%s361 + $0x31] sm:$0xff]
        %v393 = vld [vmem:[%s361 + $0x39] sm:$0xff]
        %v394 = vld [vmem:[%s361 + $0x49] sm:$0xff]
        %v395 = vld [vmem:[%s361 + $0x51] sm:$0xff]
        %v396 = vld [vmem:[#allocation3 + $0x1] sm:$0x1]
        %v397 = vperm.slane %v396, 0
        %v398 = vmul.f32 %v397, %v388
        %v399 = vmul.f32 %v397, %v389
        %v400 = vmul.f32 %v397, %v390
        %v401 = vmul.f32 %v397, %v391
        %v402 = vmul.f32 %v397, %v392
        %v403 = vmul.f32 %v397, %v393
        %v404 = vmul.f32 %v397, %v394
        %v405 = vmul.f32 %v397, %v395
        %v406 = vadd.f32 %v380, %v398
        %v407 = vadd.f32 %v381, %v399
        %v408 = vadd.f32 %v382, %v400
        %v409 = vadd.f32 %v383, %v401
        %v410 = vadd.f32 %v384, %v402
        %v411 = vadd.f32 %v385, %v403
        %v412 = vadd.f32 %v386, %v404
        %v413 = vadd.f32 %v387, %v405
        %v414 = vld [vmem:[%s361 + $0x2] sm:$0xff]
        %v415 = vld [vmem:[%s361 + $0xa] sm:$0xff]
        %v416 = vld [vmem:[%s361 + $0x1a] sm:$0xff]
        %v417 = vld [vmem:[%s361 + $0x22] sm:$0xff]
        %v418 = vld [vmem:[%s361 + $0x32] sm:$0xff]
        %v419 = vld [vmem:[%s361 + $0x3a] sm:$0xff]
        %v420 = vld [vmem:[%s361 + $0x4a] sm:$0xff]
        %v421 = vld [vmem:[%s361 + $0x52] sm:$0xff]
        %v422 = vld [vmem:[#allocation3 + $0x2] sm:$0x1]
        %v423 = vperm.slane %v422, 0
        %v424 = vmul.f32 %v423, %v414
        %v425 = vmul.f32 %v423, %v415
        %v426 = vmul.f32 %v423, %v416
        %v427 = vmul.f32 %v423, %v417
        %v428 = vmul.f32 %v423, %v418
        %v429 = vmul.f32 %v423, %v419
        %v430 = vmul.f32 %v423, %v420
        %v431 = vmul.f32 %v423, %v421
        %v432 = vadd.f32 %v406, %v424
        %v433 = vadd.f32 %v407, %v425
        %v434 = vadd.f32 %v408, %v426
        %v435 = vadd.f32 %v409, %v427
        %v436 = vadd.f32 %v410, %v428
        %v437 = vadd.f32 %v411, %v429
        %v438 = vadd.f32 %v412, %v430
        %v439 = vadd.f32 %v413, %v431
        %s440 = sadd.s32 %s359, 1
        %s441 = smul.u32 %s440, 24
        %s442 = scalar_lea.vmem [#allocation2], %s441
        %v443 = vld [vmem:[%s442] sm:$0xff]
        %v444 = vld [vmem:[%s442 + $0x8] sm:$0xff]
        %v445 = vld [vmem:[%s442 + $0x18] sm:$0xff]
        %v446 = vld [vmem:[%s442 + $0x20] sm:$0xff]
        %v447 = vld [vmem:[%s442 + $0x30] sm:$0xff]
        %v448 = vld [vmem:[%s442 + $0x38] sm:$0xff]
        %v449 = vld [vmem:[%s442 + $0x48] sm:$0xff]
        %v450 = vld [vmem:[%s442 + $0x50] sm:$0xff]
        %v451 = vld [vmem:[#allocation3 + $0x3] sm:$0x1]
        %v452 = vperm.slane %v451, 0
        %v453 = vmul.f32 %v452, %v443
        %v454 = vmul.f32 %v452, %v444
        %v455 = vmul.f32 %v452, %v445
        %v456 = vmul.f32 %v452, %v446
        %v457 = vmul.f32 %v452, %v447
        %v458 = vmul.f32 %v452, %v448
        %v459 = vmul.f32 %v452, %v449
        %v460 = vmul.f32 %v452, %v450
        %v461 = vadd.f32 %v432, %v453
        %v462 = vadd.f32 %v433, %v454
        %v463 = vadd.f32 %v434, %v455
        %v464 = vadd.f32 %v435, %v456
        %v465 = vadd.f32 %v436, %v457
        %v466 = vadd.f32 %v437, %v458
        %v467 = vadd.f32 %v438, %v459
        %v468 = vadd.f32 %v439, %v460
        %v469 = vld [vmem:[%s442 + $0x1] sm:$0xff]
        %v470 = vld [vmem:[%s442 + $0x9] sm:$0xff]
        %v471 = vld [vmem:[%s442 + $0x19] sm:$0xff]
        %v472 = vld [vmem:[%s442 + $0x21] sm:$0xff]
        %v473 = vld [vmem:[%s442 + $0x31] sm:$0xff]
        %v474 = vld [vmem:[%s442 + $0x39] sm:$0xff]
        %v475 = vld [vmem:[%s442 + $0x49] sm:$0xff]
        %v476 = vld [vmem:[%s442 + $0x51] sm:$0xff]
        %v477 = vld [vmem:[#allocation3 + $0x4] sm:$0x1]
        %v478 = vperm.slane %v477, 0
        %v479 = vmul.f32 %v478, %v469
        %v480 = vmul.f32 %v478, %v470
        %v481 = vmul.f32 %v478, %v471
        %v482 = vmul.f32 %v478, %v472
        %v483 = vmul.f32 %v478, %v473
        %v484 = vmul.f32 %v478, %v474
        %v485 = vmul.f32 %v478, %v475
        %v486 = vmul.f32 %v478, %v476
        %v487 = vadd.f32 %v461, %v479
        %v488 = vadd.f32 %v462, %v480
        %v489 = vadd.f32 %v463, %v481
        %v490 = vadd.f32 %v464, %v482
        %v491 = vadd.f32 %v465, %v483
        %v492 = vadd.f32 %v466, %v484
        %v493 = vadd.f32 %v467, %v485
        %v494 = vadd.f32 %v468, %v486
        %v495 = vld [vmem:[%s442 + $0x2] sm:$0xff]
        %v496 = vld [vmem:[%s442 + $0xa] sm:$0xff]
        %v497 = vld [vmem:[%s442 + $0x1a] sm:$0xff]
        %v498 = vld [vmem:[%s442 + $0x22] sm:$0xff]
        %v499 = vld [vmem:[%s442 + $0x32] sm:$0xff]
        %v500 = vld [vmem:[%s442 + $0x3a] sm:$0xff]
        %v501 = vld [vmem:[%s442 + $0x4a] sm:$0xff]
        %v502 = vld [vmem:[%s442 + $0x52] sm:$0xff]
        %v503 = vld [vmem:[#allocation3 + $0x5] sm:$0x1]
        %v504 = vperm.slane %v503, 0
        %v505 = vmul.f32 %v504, %v495
        %v506 = vmul.f32 %v504, %v496
        %v507 = vmul.f32 %v504, %v497
        %v508 = vmul.f32 %v504, %v498
        %v509 = vmul.f32 %v504, %v499
        %v510 = vmul.f32 %v504, %v500
        %v511 = vmul.f32 %v504, %v501
        %v512 = vmul.f32 %v504, %v502
        %v513 = vadd.f32 %v487, %v505
        %v514 = vadd.f32 %v488, %v506
        %v515 = vadd.f32 %v489, %v507
        %v516 = vadd.f32 %v490, %v508
        %v517 = vadd.f32 %v491, %v509
        %v518 = vadd.f32 %v492, %v510
        %v519 = vadd.f32 %v493, %v511
        %v520 = vadd.f32 %v494, %v512
        %s521 = sadd.s32 %s359, 2
        %s522 = smul.u32 %s521, 24
        %s523 = scalar_lea.vmem [#allocation2], %s522
        %v524 = vld [vmem:[%s523] sm:$0xff]
        %v525 = vld [vmem:[%s523 + $0x8] sm:$0xff]
        %v526 = vld [vmem:[%s523 + $0x18] sm:$0xff]
        %v527 = vld [vmem:[%s523 + $0x20] sm:$0xff]
        %v528 = vld [vmem:[%s523 + $0x30] sm:$0xff]
        %v529 = vld [vmem:[%s523 + $0x38] sm:$0xff]
        %v530 = vld [vmem:[%s523 + $0x48] sm:$0xff]
        %v531 = vld [vmem:[%s523 + $0x50] sm:$0xff]
        %v532 = vld [vmem:[#allocation3 + $0x6] sm:$0x1]
        %v533 = vperm.slane %v532, 0
        %v534 = vmul.f32 %v533, %v524
        %v535 = vmul.f32 %v533, %v525
        %v536 = vmul.f32 %v533, %v526
        %v537 = vmul.f32 %v533, %v527
        %v538 = vmul.f32 %v533, %v528
        %v539 = vmul.f32 %v533, %v529
        %v540 = vmul.f32 %v533, %v530
        %v541 = vmul.f32 %v533, %v531
        %v542 = vadd.f32 %v513, %v534
        %v543 = vadd.f32 %v514, %v535
        %v544 = vadd.f32 %v515, %v536
        %v545 = vadd.f32 %v516, %v537
        %v546 = vadd.f32 %v517, %v538
        %v547 = vadd.f32 %v518, %v539
        %v548 = vadd.f32 %v519, %v540
        %v549 = vadd.f32 %v520, %v541
        %v550 = vld [vmem:[%s523 + $0x1] sm:$0xff]
        %v551 = vld [vmem:[%s523 + $0x9] sm:$0xff]
        %v552 = vld [vmem:[%s523 + $0x19] sm:$0xff]
        %v553 = vld [vmem:[%s523 + $0x21] sm:$0xff]
        %v554 = vld [vmem:[%s523 + $0x31] sm:$0xff]
        %v555 = vld [vmem:[%s523 + $0x39] sm:$0xff]
        %v556 = vld [vmem:[%s523 + $0x49] sm:$0xff]
        %v557 = vld [vmem:[%s523 + $0x51] sm:$0xff]
        %v558 = vld [vmem:[#allocation3 + $0x7] sm:$0x1]
        %v559 = vperm.slane %v558, 0
        %v560 = vmul.f32 %v559, %v550
        %v561 = vmul.f32 %v559, %v551
        %v562 = vmul.f32 %v559, %v552
        %v563 = vmul.f32 %v559, %v553
        %v564 = vmul.f32 %v559, %v554
        %v565 = vmul.f32 %v559, %v555
        %v566 = vmul.f32 %v559, %v556
        %v567 = vmul.f32 %v559, %v557
        %v568 = vadd.f32 %v542, %v560
        %v569 = vadd.f32 %v543, %v561
        %v570 = vadd.f32 %v544, %v562
        %v571 = vadd.f32 %v545, %v563
        %v572 = vadd.f32 %v546, %v564
        %v573 = vadd.f32 %v547, %v565
        %v574 = vadd.f32 %v548, %v566
        %v575 = vadd.f32 %v549, %v567
        %v576 = vld [vmem:[%s523 + $0x2] sm:$0xff]
        %v577 = vld [vmem:[%s523 + $0xa] sm:$0xff]
        %v578 = vld [vmem:[%s523 + $0x1a] sm:$0xff]
        %v579 = vld [vmem:[%s523 + $0x22] sm:$0xff]
        %v580 = vld [vmem:[%s523 + $0x32] sm:$0xff]
        %v581 = vld [vmem:[%s523 + $0x3a] sm:$0xff]
        %v582 = vld [vmem:[%s523 + $0x4a] sm:$0xff]
        %v583 = vld [vmem:[%s523 + $0x52] sm:$0xff]
        %v584 = vld [vmem:[#allocation3 + $0x8] sm:$0x1]
        %v585 = vperm.slane %v584, 0
        %v586 = vmul.f32 %v585, %v576
        %v587 = vmul.f32 %v585, %v577
        %v588 = vmul.f32 %v585, %v578
        %v589 = vmul.f32 %v585, %v579
        %v590 = vmul.f32 %v585, %v580
        %v591 = vmul.f32 %v585, %v581
        %v592 = vmul.f32 %v585, %v582
        %v593 = vmul.f32 %v585, %v583
        %v594 = vadd.f32 %v568, %v586
        %v595 = vadd.f32 %v569, %v587
        %v596 = vadd.f32 %v570, %v588
        %v597 = vadd.f32 %v571, %v589
        %v598 = vadd.f32 %v572, %v590
        %v599 = vadd.f32 %v573, %v591
        %v600 = vadd.f32 %v574, %v592
        %v601 = vadd.f32 %v575, %v593
        %602 = vst [vmem:[%s230] sm:$0xff] %v594
        %603 = vst [vmem:[%s230 + $0x8] sm:$0xff] %v595
        %604 = vst [vmem:[%s230 + $0x10] sm:$0xff] %v596
        %605 = vst [vmem:[%s230 + $0x18] sm:$0xff] %v597
        %606 = vst [vmem:[%s230 + $0x20] sm:$0xff] %v598
        %607 = vst [vmem:[%s230 + $0x28] sm:$0xff] %v599
        %608 = vst [vmem:[%s230 + $0x30] sm:$0xff] %v600
        %609 = vst [vmem:[%s230 + $0x38] sm:$0xff] %v601
        %s610 = sand.u32 %s119, 1
        %s611 = scalar_lea.sflag [#allocation5], %s610
        %s612 = sand.u32 %s119, 1
        %s613 = smul.addr %s612, 64
        %s614 = scalar_lea.vmem [#allocation9], %s613
        // Predicated region
        $region49: #{tpu_custom_call.1} parent=31 // pred_check
          %p615 = pneg %p129
        $region50: #{tpu_custom_call.1} parent=31 // pred_check_branch
          %617 = sbr.rel (%p615) target = $region52
        $region51: #{tpu_custom_call.1} parent=31 // pred_region
          %s618 = smul.u32 4, %s24
          %620 = vsyncadd %s611, 0
          %s621 = smul.addr %s618, 2
          %s622 = sadd.s32 %s23, %s621
          %s623 = smul.addr %s622, 8
          %s624 = scalar_lea.hbm %s3, %s623
          %s625 = sshll.u32 %s614, 4
          %s626 = int_to_ptr.vmem [resolvable:$true] %s625
          %s627 = sshll.u32 %s624, 4
          %s628 = int_to_ptr.hbm [resolvable:$true] %s627
          %633 = dma.vmem_to_hbm [thread:$0]  %s626, 1024, %s628, %s611, 128, 128, 8
        $region52: #{tpu_custom_call.1} parent=31 // pred_fallthru
          _
      $region32: #{tpu_custom_call.1} parent=5 // pred_fallthru
        _
      %p634 = scmp.le.s32.totalorder 2, %s14
      // Predicated region
      $region53: #{tpu_custom_call.1} parent=5 // pred_check
        %p635 = pneg %p634
      $region54: #{tpu_custom_call.1} parent=5 // pred_check_branch
        %637 = sbr.rel (%p635) target = $region56
      $region55: #{tpu_custom_call.1} parent=5 // pred_region
        %s638 = ssub.s32 %s14, 2
        // Predicated region
        $region57: #{tpu_custom_call.1} parent=55 // pred_check
          %p639 = pneg %p135
        $region58: #{tpu_custom_call.1} parent=55 // pred_check_branch
          %641 = sbr.rel (%p639) target = $region60
        $region59: #{tpu_custom_call.1} parent=55 // pred_region
          %s642 = sand.u32 %s120, 1
          %s643 = scalar_lea.sflag [#allocation5], %s642
          %s644 = sand.u32 %s120, 1
          %s645 = smul.addr %s644, 64
          %s646 = scalar_lea.vmem [#allocation9], %s645
          %648 = dma.done %s643, 1024
        $region60: #{tpu_custom_call.1} parent=55 // pred_fallthru
          _
      $region56: #{tpu_custom_call.1} parent=5 // pred_fallthru
        _
    $region6: #{tpu_custom_call.1} parent=1 // loop_footer
      %s18 = sadd.s32 1, %s14
    $region7: #{tpu_custom_call.1} parent=1 // loop_footer_branch
      %13 = sbr.rel target = $region3
    $region8: #{tpu_custom_call.1} parent=1 // loop_exit
      _
    %649 = vsyncpa [#allocation4], 1
    %s650 = scalar_lea.sflag [#allocation4], 1
    %651 = vsyncpa %s650, 1
    %652 = vsyncpa [#allocation7], 1
    %653 = vsyncpa [#allocation5], 1
    %s654 = scalar_lea.sflag [#allocation5], 1
    %655 = vsyncpa %s654, 1

</llo_original>
